<compile_context>
chip_gen: v7x
topology: tpu7x:2x2x1
jax: 0.10.0
libtpu: 0.0.40
codegen_flags: <defaults>
</compile_context>

<pallas_src>
import jax
import jax.numpy as jnp
from jax import lax
from jax.experimental import pallas as pl
from jax.experimental.pallas import tpu as pltpu

K_RBF = 16      # number of radial basis functions (assumed uniform linspace mu)
HIDDEN = 32     # MLP hidden width
BETA = 4.0      # RBF width
EPS = 1e-12
EV_A3_TO_GPA = 160.21766208

MAX_TILE = 8192   # edges per grid step (lane-axis tile), multiple of 128
MIN_GRID = 4      # keep >= 4 grid steps at large E so both v7x TCs are fed
T_CAP = 10.0      # clip for the linear RBF exponent: |t^8| <= e^80, no f32 overflow


def _round_up(n, m):
    return -(-n // m) * m


def _choose_tile(n_edges):
    """Biggest lane-dense tile that still leaves >= MIN_GRID steps at large E."""
    return max(128, min(MAX_TILE, _round_up(pl.cdiv(n_edges, MIN_GRID), 128)))


# ----------------------------------------------------------------------------- #
# Pallas kernel: per-edge energy + analytic d(edge_energy)/d(bond_vec)
# Layout: edges on lanes.  vec_ref (3, TE); out_ref (4, TE) = [dvec ; e].
# ----------------------------------------------------------------------------- #
def edge_energy_grad_kernel(vec_ref, mu_ref, ck_ref, w1_ref, b1_ref, w2_ref,
                            scal_ref, out_ref):
    v = vec_ref[...]                                        # (3, TE) f32
    r2 = jnp.sum(v * v, axis=0, keepdims=True)              # (1, TE)
    inv_r = lax.rsqrt(r2 + EPS)                             # (1, TE)  (EUP)
    # NOTE: r = r2*rsqrt(r2+EPS) differs from the reference sqrt(r2+EPS) by
    # ~EPS/(2r) and is exactly 0 for zero-length (padded-tail) bonds -- harmless
    # at 1e-4 tolerance, but don't stack approx-rsqrt / bf16 changes on top.
    r = r2 * inv_r                                          # (1, TE)

    # ---- RBF via the linspace factorisation: 2 exps instead of K=16 ----
    mu_c = scal_ref[1]                                      # centre mu (SMEM scalar)
    tbd = scal_ref[2]                                       # 2*BETA*delta
    x = r - mu_c                                            # (1, TE)
    base = jnp.exp(-BETA * (x * x))                         # (1, TE)  EUP exp #1
    # clip keeps t^8 finite; only activates where the true RBF is already ~0
    lin = jnp.clip(tbd * x, -T_CAP, T_CAP)                  # (1, TE)
    t = jnp.exp(lin)                                        # (1, TE)  EUP exp #2
    it = 1.0 / t                                            # exact recip (tolerance)

    # t^(k-8) by signed binary exponentiation: u = t (k>=8) else 1/t, m = |k-8|.
    # Selects use (K,1) constant masks -> pure VPU work, no EUP.
    kk = lax.broadcasted_iota(jnp.int32, (K_RBF, 1), 0)     # (K, 1)
    m = jnp.abs(kk - K_RBF // 2)                            # |k-8| in [0, 8]
    u = jnp.where(kk >= K_RBF // 2, t, it)                  # (K, TE)
    u2 = u * u
    u4 = u2 * u2
    p = jnp.where((m & 1) != 0, u, 1.0)
    p = p * jnp.where((m & 2) != 0, u2, 1.0)
    p = p * jnp.where((m & 4) != 0, u4, 1.0)
    p = p * jnp.where((m & 8) != 0, u4 * u4, 1.0)           # only k=0 has m=8
    # grouping (base*p) first keeps every intermediate well inside f32 range
    rbf = ck_ref[...] * (base * p)                          # (K, TE)

    diff = r - mu_ref[...]                                  # (K, TE), reused below

    # ---- MLP forward: edges stay the lane (N) dim; MXU has huge slack ----
    pre = lax.dot_general(w1_ref[...], rbf, (((0,), (0,)), ((), ())),
                          preferred_element_type=jnp.float32) + b1_ref[...]
    h = jnp.tanh(pre)                                       # (H, TE)  (EUP)
    e = lax.dot_general(w2_ref[...], h, (((0,), (0,)), ((), ())),
                        preferred_element_type=jnp.float32) + scal_ref[0]

    # ---- analytic backward w.r.t. bond vector ----
    dh = (1.0 - h * h) * w2_ref[...]                        # (H, TE)
    drbf = lax.dot_general(w1_ref[...], dh, (((1,), (0,)), ((), ())),
                           preferred_element_type=jnp.float32)   # (K, TE)
    # -2*BETA folded out of the (K,TE) product into the (1,TE) stage
    dr = jnp.sum(drbf * (diff * rbf), axis=0, keepdims=True)     # (1, TE)
    dvec = ((-2.0 * BETA) * (dr * inv_r)) * v               # (3, TE)

    # NOTE: padded tail edges (zero bond vectors) produce nonzero e/dvec here;
    # they are sliced off in the wrapper.  If the gather/scatter glue is ever
    # fused into this kernel, the tail must be masked explicitly.
    out_ref[0:3, :] = dvec
    out_ref[3:4, :] = e


def run_edge_kernel(bond_vec_t, mu, w1, b1, w2col, b2):
    """bond_vec_t: (3, E) f32, edges on lanes.  Returns e_edge (E,), dvec_t (3, E)."""
    E = bond_vec_t.shape[1]
    tile = _choose_tile(E)
    epad = _round_up(E, tile)

    vec_t = bond_vec_t.astype(jnp.float32)
    if epad != E:
        vec_t = jnp.pad(vec_t, ((0, 0), (0, epad - E)))     # tail-only padding

    # Factorisation constants (mu assumed to be a uniform linspace).
    delta = mu[1, 0] - mu[0, 0]
    mu_c = mu[K_RBF // 2, 0]
    ck = jnp.exp(-BETA * (mu - mu_c) ** 2).astype(jnp.float32)       # (K, 1)
    scal = jnp.stack([b2[0], mu_c, 2.0 * BETA * delta]).astype(jnp.float32)

    cost = pl.CostEstimate(flops=2400 * epad,
                           transcendentals=36 * epad,
                           bytes_accessed=28 * epad)

    out = pl.pallas_call(
        edge_energy_grad_kernel,
        out_shape=jax.ShapeDtypeStruct((4, epad), jnp.float32),
        grid_spec=pltpu.PrefetchScalarGridSpec(
            num_scalar_prefetch=0,
            grid=(epad // tile,),
            in_specs=[
                pl.BlockSpec((3, tile), lambda i: (0, i)),            # bond vecs
                pl.BlockSpec((K_RBF, 1), lambda i: (0, 0)),           # mu
                pl.BlockSpec((K_RBF, 1), lambda i: (0, 0)),           # exp(-B dmu^2)
                pl.BlockSpec((K_RBF, HIDDEN), lambda i: (0, 0)),      # w1
                pl.BlockSpec((HIDDEN, 1), lambda i: (0, 0)),          # b1
                pl.BlockSpec((HIDDEN, 1), lambda i: (0, 0)),          # w2 (column)
                pl.BlockSpec(memory_space=pltpu.MemorySpace.SMEM),    # [b2, mu_c, 2Bd]
            ],
            out_specs=pl.BlockSpec((4, tile), lambda i: (0, i))),
        compiler_params=pltpu.CompilerParams(
            # If an xprof trace ever shows one idle v7x TC, switch to
            # pltpu.CORE_PARALLEL; "parallel" keeps grid steps independent.
            dimension_semantics=("parallel",),
            vmem_limit_bytes=48 * 1024 * 1024),   # headroom for the 8192 tile
        cost_estimate=cost,
    )(vec_t, mu, ck, w1, b1, w2col, scal)

    e_edge = out[3, :E]            # (E,)
    dvec_t = out[0:3, :E]          # (3, E)
    return e_edge, dvec_t


# ----------------------------------------------------------------------------- #
# Potential.forward equivalent
# ----------------------------------------------------------------------------- #
def potential_forward(pos, z, src, dst, edge_gid, node_gid, node_volume,
                      nodes_per_graph, params, data_mean, data_std,
                      element_refs, n_graphs):
    mu, w1, b1, w2col, b2, atom_embed = params

    # Bond vectors built directly in the kernel's (3, E) edges-on-lanes layout:
    # only a node-sized transpose, no E-sized transpose/pad/transpose round trip.
    pos_t = pos.astype(jnp.float32).T                            # (3, N)
    bond_vec_t = pos_t[:, dst] - pos_t[:, src]                   # (3, E)

    # TODO(synk): scalar-prefetch src/dst and do the pos gather (and the dE_dvec
    # scatter-add) inside the kernel at large E; left in XLA here.
    e_edge, dvec_t = run_edge_kernel(bond_vec_t, mu, w1, b1, w2col, b2)

    # model prediction: per-graph total energy
    edge_e_per_graph = jax.ops.segment_sum(e_edge, edge_gid, n_graphs)
    atom_e_per_graph = jax.ops.segment_sum(atom_embed[z], node_gid, n_graphs)
    model_energies = edge_e_per_graph + atom_e_per_graph         # (G,)

    # total_energies = data_std * model + data_mean  (+ AtomRef offset)
    total_energies = data_std * model_energies + data_mean
    property_offset = jax.ops.segment_sum(element_refs[z], node_gid, n_graphs)
    total_energies = total_energies + property_offset            # (G,)

    # gradients of total_energies w.r.t. bond_vec and pos (analytic chain rule)
    dE_dvec_t = data_std * dvec_t                                # (3, E)
    dE_dpos_t = (jnp.zeros_like(pos_t).at[:, dst].add(dE_dvec_t)
                 .at[:, src].add(-dE_dvec_t))                    # (3, N)
    forces = -dE_dpos_t.T                                        # (N, 3)
    f_ij_t = -dE_dvec_t                                          # (3, E)

    # stresses: per graph  -160.2177 * bond_vec_g^T @ f_ij_g / volume(first node)
    # one-hot einsum keeps everything in the (., E) layout (no E-sized transpose)
    onehot = (edge_gid[None, :] == jnp.arange(n_graphs)[:, None]).astype(jnp.float32)
    per_graph = jnp.einsum('ae,be,ge->gab', bond_vec_t, f_ij_t, onehot)  # (G,3,3)
    first_node = jnp.concatenate(
        [jnp.zeros((1,), jnp.int32), jnp.cumsum(nodes_per_graph)[:-1]])
    vol = node_volume[first_node]                                # (G,)
    stresses = (-EV_A3_TO_GPA * per_graph / vol[:, None, None]).reshape(3 * n_graphs, 3)

    # TODO(synk): calc_hessian path (row-by-row autograd loop) not implemented;
    # matches default calc_hessian=False -> zeros(1).
    hessian = jnp.zeros((1,), jnp.float32)

    return total_energies, forces, stresses, hessian


# ----------------------------------------------------------------------------- #
# pure-JAX reference for the kernel (correctness check of energy + gradient)
# ----------------------------------------------------------------------------- #
def _edge_energy_ref(vec, mu, w1, b1, w2col, b2):
    r = jnp.sqrt(jnp.sum(vec * vec) + EPS)
    rbf = jnp.exp(-BETA * (r - mu[:, 0]) ** 2)        # (K,)
    h = jnp.tanh(rbf @ w1 + b1[:, 0])                 # (H,)
    return jnp.dot(h, w2col[:, 0]) + b2[0]


if __name__ == "__main__":
    key = jax.random.PRNGKey(0)
    k_pos, k_z, k_w1, k_b1, k_w2, k_emb = jax.random.split(key, 6)

    # synthetic batched "graph": 2 graphs x 8 atoms, 4 neighbours/atom -> 64 edges
    n_graphs, atoms_per_graph, n_elem = 2, 8, 10
    N = n_graphs * atoms_per_graph
    src_l, dst_l, egid_l = [], [], []
    for g in range(n_graphs):
        base = g * atoms_per_graph
        for i in range(atoms_per_graph):
            for k in (1, 2, 3, 4):
                src_l.append(base + i)
                dst_l.append(base + (i + k) % atoms_per_graph)
                egid_l.append(g)
    src = jnp.array(src_l, jnp.int32)
    dst = jnp.array(dst_l, jnp.int32)
    edge_gid = jnp.array(egid_l, jnp.int32)
    node_gid = jnp.repeat(jnp.arange(n_graphs, dtype=jnp.int32), atoms_per_graph)
    nodes_per_graph = jnp.full((n_graphs,), atoms_per_graph, jnp.int32)

    pos = 1.5 * jax.random.normal(k_pos, (N, 3), jnp.float32)
    z = jax.random.randint(k_z, (N,), 0, n_elem)
    node_volume = jnp.array([100.0, 120.0], jnp.float32)[node_gid]   # per-node cell volume

    # deterministic parameters (edge-on-lane layout: column vectors for mu/b1/w2)
    mu = jnp.linspace(0.0, 4.0, K_RBF, dtype=jnp.float32).reshape(K_RBF, 1)
    w1 = 0.3 * jax.random.normal(k_w1, (K_RBF, HIDDEN), jnp.float32)
    b1 = 0.1 * jax.random.normal(k_b1, (HIDDEN, 1), jnp.float32)
    w2col = 0.3 * jax.random.normal(k_w2, (HIDDEN, 1), jnp.float32)
    b2 = jnp.full((1,), 0.05, jnp.float32)
    atom_embed = 0.2 * jax.random.normal(k_emb, (n_elem,), jnp.float32)
    params = (mu, w1, b1, w2col, b2, atom_embed)

    element_refs = (jnp.arange(n_elem, dtype=jnp.float32) * 0.05 - 0.2)
    data_mean, data_std = jnp.float32(0.1), jnp.float32(2.0)

    total_energies, forces, stresses, hessian = jax.block_until_ready(
        potential_forward(pos, z, src, dst, edge_gid, node_gid, node_volume,
                          nodes_per_graph, params, data_mean, data_std,
                          element_refs, n_graphs))

    # sanity-check kernel energy & analytic gradient against pure-JAX autodiff
    bond_vec = pos[dst] - pos[src]
    e_k, g_k_t = run_edge_kernel(bond_vec.T, mu, w1, b1, w2col, b2)
    g_k = g_k_t.T
    e_ref, g_ref = jax.vmap(
        jax.value_and_grad(_edge_energy_ref), in_axes=(0, None, None, None, None, None)
    )(bond_vec, mu, w1, b1, w2col, b2)
    assert jnp.allclose(e_k, e_ref, atol=1e-4, rtol=1e-4)
    assert jnp.allclose(g_k, g_ref, atol=1e-4, rtol=1e-4)
    assert total_energies.shape == (n_graphs,)
    assert forces.shape == (N, 3)
    assert stresses.shape == (3 * n_graphs, 3)
    assert hessian.shape == (1,)

    print("KERNEL_OK")
</pallas_src>

<mosaic_0001>
module attributes {stable_mosaic.version = 11 : i64} {
  func.func @edge_energy_grad_kernel(%arg0: i32, %arg1: memref<3x128xf32, #tpu.memory_space<vmem>>, %arg2: memref<16x1xf32, #tpu.memory_space<vmem>>, %arg3: memref<16x1xf32, #tpu.memory_space<vmem>>, %arg4: memref<16x32xf32, #tpu.memory_space<vmem>>, %arg5: memref<32x1xf32, #tpu.memory_space<vmem>>, %arg6: memref<32x1xf32, #tpu.memory_space<vmem>>, %arg7: memref<3xf32, #tpu.memory_space<smem>>, %arg8: memref<4x128xf32, #tpu.memory_space<vmem>>) attributes {dimension_semantics = [#tpu.dimension_semantics<parallel>], iteration_bounds = array<i64: 1>, scalar_prefetch = 0 : i64, scratch_operands = 0 : i64, tpu.core_type = #tpu.core_type<tc>, window_params = [{transform_indices = @transform_0, window_bounds = array<i64: 3, 128>}, {pipeline_mode = #tpu.pipeline_mode<synchronous>, transform_indices = @transform_1, window_bounds = array<i64: 16, 1>}, {pipeline_mode = #tpu.pipeline_mode<synchronous>, transform_indices = @transform_2, window_bounds = array<i64: 16, 1>}, {pipeline_mode = #tpu.pipeline_mode<synchronous>, transform_indices = @transform_3, window_bounds = array<i64: 16, 32>}, {pipeline_mode = #tpu.pipeline_mode<synchronous>, transform_indices = @transform_4, window_bounds = array<i64: 32, 1>}, {pipeline_mode = #tpu.pipeline_mode<synchronous>, transform_indices = @transform_5, window_bounds = array<i64: 32, 1>}, {transform_indices = @transform_6, window_bounds = array<i64: 3>}, {transform_indices = @transform_7, window_bounds = array<i64: 4, 128>}]} {
    %c0 = arith.constant 0 : index
    %c0_0 = arith.constant 0 : index
    %0 = vector.load %arg1[%c0, %c0_0] : memref<3x128xf32, #tpu.memory_space<vmem>>, vector<3x128xf32>
    %1 = arith.mulf %0, %0 : vector<3x128xf32>
    %cst = arith.constant dense<0.000000e+00> : vector<128xf32>
    %2 = vector.multi_reduction <add>, %1, %cst [0] : vector<3x128xf32> to vector<128xf32>
    %3 = vector.shape_cast %2 : vector<128xf32> to vector<1x128xf32>
    %cst_1 = arith.constant 9.99999996E-13 : f32
    %4 = vector.broadcast %cst_1 : f32 to vector<1x128xf32>
    %5 = arith.addf %3, %4 : vector<1x128xf32>
    %6 = math.rsqrt %5 : vector<1x128xf32>
    %7 = arith.mulf %3, %6 : vector<1x128xf32>
    %c1 = arith.constant 1 : index
    %8 = memref.load %arg7[%c1] : memref<3xf32, #tpu.memory_space<smem>>
    %c2 = arith.constant 2 : index
    %9 = memref.load %arg7[%c2] : memref<3xf32, #tpu.memory_space<smem>>
    %10 = vector.broadcast %8 : f32 to vector<1x128xf32>
    %11 = arith.subf %7, %10 : vector<1x128xf32>
    %12 = arith.mulf %11, %11 : vector<1x128xf32>
    %cst_2 = arith.constant -4.000000e+00 : f32
    %13 = vector.broadcast %cst_2 : f32 to vector<1x128xf32>
    %14 = arith.mulf %13, %12 : vector<1x128xf32>
    %15 = math.exp %14 : vector<1x128xf32>
    %16 = vector.broadcast %9 : f32 to vector<1x128xf32>
    %17 = arith.mulf %16, %11 : vector<1x128xf32>
    %cst_3 = arith.constant -1.000000e+01 : f32
    %cst_4 = arith.constant 1.000000e+01 : f32
    %18 = vector.broadcast %cst_3 : f32 to vector<1x128xf32>
    %19 = arith.maximumf %18, %17 : vector<1x128xf32>
    %20 = vector.broadcast %cst_4 : f32 to vector<1x128xf32>
    %21 = arith.minimumf %20, %19 : vector<1x128xf32>
    %22 = math.exp %21 : vector<1x128xf32>
    %cst_5 = arith.constant 1.000000e+00 : f32
    %23 = vector.broadcast %cst_5 : f32 to vector<1x128xf32>
    %24 = arith.divf %23, %22 : vector<1x128xf32>
    %25 = tpu.iota {dimensions = array<i32: 0>} : vector<16x1xi32>
    %c8_i32 = arith.constant 8 : i32
    %26 = vector.broadcast %c8_i32 : i32 to vector<16x1xi32>
    %27 = arith.subi %25, %26 : vector<16x1xi32>
    %28 = math.absi %27 : vector<16x1xi32>
    %c8_i32_6 = arith.constant 8 : i32
    %29 = vector.broadcast %c8_i32_6 : i32 to vector<16x1xi32>
    %30 = arith.cmpi sge, %25, %29 : vector<16x1xi32>
    %31 = vector.shape_cast %30 : vector<16x1xi1> to vector<16x1xi1>
    %32 = vector.broadcast %31 : vector<16x1xi1> to vector<16x128xi1>
    %33 = vector.shape_cast %22 : vector<1x128xf32> to vector<1x128xf32>
    %34 = vector.broadcast %33 : vector<1x128xf32> to vector<16x128xf32>
    %35 = vector.shape_cast %24 : vector<1x128xf32> to vector<1x128xf32>
    %36 = vector.broadcast %35 : vector<1x128xf32> to vector<16x128xf32>
    %37 = arith.select %32, %34, %36 : vector<16x128xi1>, vector<16x128xf32>
    %38 = arith.mulf %37, %37 : vector<16x128xf32>
    %39 = arith.mulf %38, %38 : vector<16x128xf32>
    %c1_i32 = arith.constant 1 : i32
    %40 = vector.broadcast %c1_i32 : i32 to vector<16x1xi32>
    %41 = arith.andi %28, %40 : vector<16x1xi32>
    %c0_i32 = arith.constant 0 : i32
    %42 = vector.broadcast %c0_i32 : i32 to vector<16x1xi32>
    %43 = arith.cmpi ne, %41, %42 : vector<16x1xi32>
    %cst_7 = arith.constant 1.000000e+00 : f32
    %44 = vector.shape_cast %43 : vector<16x1xi1> to vector<16x1xi1>
    %45 = vector.broadcast %44 : vector<16x1xi1> to vector<16x128xi1>
    %46 = vector.broadcast %cst_7 : f32 to vector<16x128xf32>
    %47 = arith.select %45, %37, %46 : vector<16x128xi1>, vector<16x128xf32>
    %c2_i32 = arith.constant 2 : i32
    %48 = vector.broadcast %c2_i32 : i32 to vector<16x1xi32>
    %49 = arith.andi %28, %48 : vector<16x1xi32>
    %c0_i32_8 = arith.constant 0 : i32
    %50 = vector.broadcast %c0_i32_8 : i32 to vector<16x1xi32>
    %51 = arith.cmpi ne, %49, %50 : vector<16x1xi32>
    %cst_9 = arith.constant 1.000000e+00 : f32
    %52 = vector.shape_cast %51 : vector<16x1xi1> to vector<16x1xi1>
    %53 = vector.broadcast %52 : vector<16x1xi1> to vector<16x128xi1>
    %54 = vector.broadcast %cst_9 : f32 to vector<16x128xf32>
    %55 = arith.select %53, %38, %54 : vector<16x128xi1>, vector<16x128xf32>
    %56 = arith.mulf %47, %55 : vector<16x128xf32>
    %c4_i32 = arith.constant 4 : i32
    %57 = vector.broadcast %c4_i32 : i32 to vector<16x1xi32>
    %58 = arith.andi %28, %57 : vector<16x1xi32>
    %c0_i32_10 = arith.constant 0 : i32
    %59 = vector.broadcast %c0_i32_10 : i32 to vector<16x1xi32>
    %60 = arith.cmpi ne, %58, %59 : vector<16x1xi32>
    %cst_11 = arith.constant 1.000000e+00 : f32
    %61 = vector.shape_cast %60 : vector<16x1xi1> to vector<16x1xi1>
    %62 = vector.broadcast %61 : vector<16x1xi1> to vector<16x128xi1>
    %63 = vector.broadcast %cst_11 : f32 to vector<16x128xf32>
    %64 = arith.select %62, %39, %63 : vector<16x128xi1>, vector<16x128xf32>
    %65 = arith.mulf %56, %64 : vector<16x128xf32>
    %c8_i32_12 = arith.constant 8 : i32
    %66 = vector.broadcast %c8_i32_12 : i32 to vector<16x1xi32>
    %67 = arith.andi %28, %66 : vector<16x1xi32>
    %c0_i32_13 = arith.constant 0 : i32
    %68 = vector.broadcast %c0_i32_13 : i32 to vector<16x1xi32>
    %69 = arith.cmpi ne, %67, %68 : vector<16x1xi32>
    %70 = arith.mulf %39, %39 : vector<16x128xf32>
    %cst_14 = arith.constant 1.000000e+00 : f32
    %71 = vector.shape_cast %69 : vector<16x1xi1> to vector<16x1xi1>
    %72 = vector.broadcast %71 : vector<16x1xi1> to vector<16x128xi1>
    %73 = vector.broadcast %cst_14 : f32 to vector<16x128xf32>
    %74 = arith.select %72, %70, %73 : vector<16x128xi1>, vector<16x128xf32>
    %75 = arith.mulf %65, %74 : vector<16x128xf32>
    %c0_15 = arith.constant 0 : index
    %c0_16 = arith.constant 0 : index
    %76 = vector.load %arg3[%c0_15, %c0_16] : memref<16x1xf32, #tpu.memory_space<vmem>>, vector<16x1xf32>
    %77 = vector.broadcast %15 : vector<1x128xf32> to vector<16x128xf32>
    %78 = arith.mulf %77, %75 : vector<16x128xf32>
    %79 = vector.broadcast %76 : vector<16x1xf32> to vector<16x128xf32>
    %80 = arith.mulf %79, %78 : vector<16x128xf32>
    %c0_17 = arith.constant 0 : index
    %c0_18 = arith.constant 0 : index
    %81 = vector.load %arg2[%c0_17, %c0_18] : memref<16x1xf32, #tpu.memory_space<vmem>>, vector<16x1xf32>
    %82 = vector.broadcast %7 : vector<1x128xf32> to vector<16x128xf32>
    %83 = vector.broadcast %81 : vector<16x1xf32> to vector<16x128xf32>
    %84 = arith.subf %82, %83 : vector<16x128xf32>
    %c0_19 = arith.constant 0 : index
    %c0_20 = arith.constant 0 : index
    %85 = vector.load %arg4[%c0_19, %c0_20] : memref<16x32xf32, #tpu.memory_space<vmem>>, vector<16x32xf32>
    %cst_21 = arith.constant dense<0.000000e+00> : vector<32x128xf32>
    %86 = tpu.matmul %85, %80, %cst_21 {dimension_numbers = #tpu.dot_dimension_numbers<[0], [0], [1], [1], [0, 1, 1, 1], [], []>} : vector<16x32xf32>, vector<16x128xf32>, vector<32x128xf32> -> vector<32x128xf32>
    %c0_22 = arith.constant 0 : index
    %c0_23 = arith.constant 0 : index
    %87 = vector.load %arg5[%c0_22, %c0_23] : memref<32x1xf32, #tpu.memory_space<vmem>>, vector<32x1xf32>
    %88 = vector.broadcast %87 : vector<32x1xf32> to vector<32x128xf32>
    %89 = arith.addf %86, %88 : vector<32x128xf32>
    %90 = math.tanh %89 : vector<32x128xf32>
    %c0_24 = arith.constant 0 : index
    %c0_25 = arith.constant 0 : index
    %91 = vector.load %arg6[%c0_24, %c0_25] : memref<32x1xf32, #tpu.memory_space<vmem>>, vector<32x1xf32>
    %cst_26 = arith.constant dense<0.000000e+00> : vector<1x128xf32>
    %92 = tpu.matmul %91, %90, %cst_26 {dimension_numbers = #tpu.dot_dimension_numbers<[0], [0], [1], [1], [0, 1, 1, 1], [], []>} : vector<32x1xf32>, vector<32x128xf32>, vector<1x128xf32> -> vector<1x128xf32>
    %c0_27 = arith.constant 0 : index
    %93 = memref.load %arg7[%c0_27] : memref<3xf32, #tpu.memory_space<smem>>
    %94 = vector.broadcast %93 : f32 to vector<1x128xf32>
    %95 = arith.addf %92, %94 : vector<1x128xf32>
    %96 = arith.mulf %90, %90 : vector<32x128xf32>
    %cst_28 = arith.constant 1.000000e+00 : f32
    %97 = vector.broadcast %cst_28 : f32 to vector<32x128xf32>
    %98 = arith.subf %97, %96 : vector<32x128xf32>
    %c0_29 = arith.constant 0 : index
    %c0_30 = arith.constant 0 : index
    %99 = vector.load %arg6[%c0_29, %c0_30] : memref<32x1xf32, #tpu.memory_space<vmem>>, vector<32x1xf32>
    %100 = vector.broadcast %99 : vector<32x1xf32> to vector<32x128xf32>
    %101 = arith.mulf %98, %100 : vector<32x128xf32>
    %c0_31 = arith.constant 0 : index
    %c0_32 = arith.constant 0 : index
    %102 = vector.load %arg4[%c0_31, %c0_32] : memref<16x32xf32, #tpu.memory_space<vmem>>, vector<16x32xf32>
    %cst_33 = arith.constant dense<0.000000e+00> : vector<16x128xf32>
    %103 = tpu.matmul %102, %101, %cst_33 {dimension_numbers = #tpu.dot_dimension_numbers<[1], [0], [0], [1], [0, 0, 1, 1], [], []>} : vector<16x32xf32>, vector<32x128xf32>, vector<16x128xf32> -> vector<16x128xf32>
    %104 = arith.mulf %84, %80 : vector<16x128xf32>
    %105 = arith.mulf %103, %104 : vector<16x128xf32>
    %cst_34 = arith.constant dense<0.000000e+00> : vector<128xf32>
    %106 = vector.multi_reduction <add>, %105, %cst_34 [0] : vector<16x128xf32> to vector<128xf32>
    %107 = vector.shape_cast %106 : vector<128xf32> to vector<1x128xf32>
    %108 = arith.mulf %107, %6 : vector<1x128xf32>
    %cst_35 = arith.constant -8.000000e+00 : f32
    %109 = vector.broadcast %cst_35 : f32 to vector<1x128xf32>
    %110 = arith.mulf %109, %108 : vector<1x128xf32>
    %111 = vector.broadcast %110 : vector<1x128xf32> to vector<3x128xf32>
    %112 = arith.mulf %111, %0 : vector<3x128xf32>
    %c0_36 = arith.constant 0 : index
    %c0_37 = arith.constant 0 : index
    %113 = vector.load %arg8[%c0_36, %c0_37] : memref<4x128xf32, #tpu.memory_space<vmem>>, vector<3x128xf32>
    tpu.vector_store %arg8[%c0_36, %c0_37], %112 {strides = array<i32>} : memref<4x128xf32, #tpu.memory_space<vmem>>, vector<3x128xf32>,
    %c3 = arith.constant 3 : index
    %c0_38 = arith.constant 0 : index
    %114 = vector.load %arg8[%c3, %c0_38] : memref<4x128xf32, #tpu.memory_space<vmem>>, vector<1x128xf32>
    tpu.vector_store %arg8[%c3, %c0_38], %95 {strides = array<i32>} : memref<4x128xf32, #tpu.memory_space<vmem>>, vector<1x128xf32>,
    return
  }
  func.func @transform_0(%arg0: i32) -> (i32, i32) {
    %c0_i32 = arith.constant 0 : i32
    %c0_i32_0 = arith.constant 0 : i32
    return %c0_i32, %arg0 : i32, i32
  }
  func.func @transform_1(%arg0: i32) -> (i32, i32) {
    %c0_i32 = arith.constant 0 : i32
    %c0_i32_0 = arith.constant 0 : i32
    %c0_i32_1 = arith.constant 0 : i32
    return %c0_i32, %c0_i32_0 : i32, i32
  }
  func.func @transform_2(%arg0: i32) -> (i32, i32) {
    %c0_i32 = arith.constant 0 : i32
    %c0_i32_0 = arith.constant 0 : i32
    %c0_i32_1 = arith.constant 0 : i32
    return %c0_i32, %c0_i32_0 : i32, i32
  }
  func.func @transform_3(%arg0: i32) -> (i32, i32) {
    %c0_i32 = arith.constant 0 : i32
    %c0_i32_0 = arith.constant 0 : i32
    %c0_i32_1 = arith.constant 0 : i32
    return %c0_i32, %c0_i32_0 : i32, i32
  }
  func.func @transform_4(%arg0: i32) -> (i32, i32) {
    %c0_i32 = arith.constant 0 : i32
    %c0_i32_0 = arith.constant 0 : i32
    %c0_i32_1 = arith.constant 0 : i32
    return %c0_i32, %c0_i32_0 : i32, i32
  }
  func.func @transform_5(%arg0: i32) -> (i32, i32) {
    %c0_i32 = arith.constant 0 : i32
    %c0_i32_0 = arith.constant 0 : i32
    %c0_i32_1 = arith.constant 0 : i32
    return %c0_i32, %c0_i32_0 : i32, i32
  }
  func.func @transform_6(%arg0: i32) -> i32 {
    %c0_i32 = arith.constant 0 : i32
    %c0_i32_0 = arith.constant 0 : i32
    return %c0_i32 : i32
  }
  func.func @transform_7(%arg0: i32) -> (i32, i32) {
    %c0_i32 = arith.constant 0 : i32
    %c0_i32_0 = arith.constant 0 : i32
    return %c0_i32, %arg0 : i32, i32
  }
}

</mosaic_0001>

<llo_original>
// kernel: tpu_custom_call.1
$region0: #{tpu_custom_call.1}
  #allocation0 [shape = 'u32[]', space=smem, size = 0x4, offset = 0x4, fixed_abs, tag = 'smem constant byte address 0x4 - core index']
  #allocation1 [shape = 'u32[144,128]{1,0:T(1,128)}', space=vmem, size = 0x12000, scoped, tag = 'internal scratch']
  %s0 = inlined_call_operand.vmem [shape: f32[3,128], index: 0, kind: input, shape index: {}]
  %s1 = inlined_call_operand.vmem [shape: f32[16,1], index: 1, kind: input, shape index: {}]
  %s2 = inlined_call_operand.vmem [shape: f32[16,1], index: 2, kind: input, shape index: {}]
  %s3 = inlined_call_operand.vmem [shape: f32[16,32], index: 3, kind: input, shape index: {}]
  %s4 = inlined_call_operand.vmem [shape: f32[32,1], index: 4, kind: input, shape index: {}]
  %s5 = inlined_call_operand.vmem [shape: f32[32,1], index: 5, kind: input, shape index: {}]
  %s6 = inlined_call_operand.vmem [shape: f32[3], index: 6, kind: input, shape index: {}]
  %s7 = inlined_call_operand.hbm [shape: f32[4,128], index: 7, kind: output, shape index: {}]
  %s8 = sld [smem:[#allocation0]]
  $region42: #{tpu_custom_call.1} parent=0
    _
  %s10 = ssub.s32 1, %s8
  %s11 = scalar_select 0, %s10, %s8
  $region1: #{tpu_custom_call.1} parent=0
    #allocation2 [shape = 'u8[512]{0}', space=smem, size = 0x200, scoped, tag = 'input window, operand 6, single buffered']
    #allocation3 [shape = 's32[1]{0}', space=sflag, size = 0x4, scoped, tag = 'scoped memory for tpu_custom_call.1']
    #allocation4 [shape = 's32[1]{0}', space=sflag, size = 0x4, scoped, tag = 'scoped memory for tpu_custom_call.1']
    #allocation5 [shape = 'u8[2048]{0}', space=vmem, size = 0x800, scoped, tag = 'output window, operand 0, single buffered']
    %12 = vsyncpa [#allocation4], 0
    %13 = vsyncpa [#allocation3], 0
    // Predicated region
    $region2: #{tpu_custom_call.1} parent=1 // pred_check
      _
    $region3: #{tpu_custom_call.1} parent=1 // pred_check_branch
      %15 = sbr.rel (0) target = $region5
    $region4: #{tpu_custom_call.1} parent=1 // pred_region
      _
    $region5: #{tpu_custom_call.1} parent=1 // pred_fallthru
      _
    // Predicated region
    $region6: #{tpu_custom_call.1} parent=1 // pred_check
      _
    $region7: #{tpu_custom_call.1} parent=1 // pred_check_branch
      %17 = sbr.rel (0) target = $region9
    $region8: #{tpu_custom_call.1} parent=1 // pred_region
      _
    $region9: #{tpu_custom_call.1} parent=1 // pred_fallthru
      _
    // Predicated region
    $region10: #{tpu_custom_call.1} parent=1 // pred_check
      _
    $region11: #{tpu_custom_call.1} parent=1 // pred_check_branch
      %19 = sbr.rel (0) target = $region13
    $region12: #{tpu_custom_call.1} parent=1 // pred_region
      _
    $region13: #{tpu_custom_call.1} parent=1 // pred_fallthru
      _
    // Predicated region
    $region14: #{tpu_custom_call.1} parent=1 // pred_check
      _
    $region15: #{tpu_custom_call.1} parent=1 // pred_check_branch
      %21 = sbr.rel (0) target = $region17
    $region16: #{tpu_custom_call.1} parent=1 // pred_region
      _
    $region17: #{tpu_custom_call.1} parent=1 // pred_fallthru
      _
    // Predicated region
    $region18: #{tpu_custom_call.1} parent=1 // pred_check
      _
    $region19: #{tpu_custom_call.1} parent=1 // pred_check_branch
      %23 = sbr.rel (0) target = $region21
    $region20: #{tpu_custom_call.1} parent=1 // pred_region
      _
    $region21: #{tpu_custom_call.1} parent=1 // pred_fallthru
      _
    // Predicated region
    $region22: #{tpu_custom_call.1} parent=1 // pred_check
      _
    $region23: #{tpu_custom_call.1} parent=1 // pred_check_branch
      %25 = sbr.rel (0) target = $region25
    $region24: #{tpu_custom_call.1} parent=1 // pred_region
      _
    $region25: #{tpu_custom_call.1} parent=1 // pred_fallthru
      _
    // Predicated region
    $region26: #{tpu_custom_call.1} parent=1 // pred_check
      _
    $region27: #{tpu_custom_call.1} parent=1 // pred_check_branch
      %27 = sbr.rel (0) target = $region29
    $region28: #{tpu_custom_call.1} parent=1 // pred_region
      %s29 = ssub.s32 16, 16
      %30 = vsyncadd [#allocation4], %s29
      %s32 = sshll.u32 %s6, 4
      %s33 = int_to_ptr.vmem [resolvable:$true] %s32
      %35 = dma.vmem_to_smem %s33, 16, [#allocation2], [#allocation4]
    $region29: #{tpu_custom_call.1} parent=1 // pred_fallthru
      _
    // Predicated region
    $region30: #{tpu_custom_call.1} parent=1 // pred_check
      _
    $region31: #{tpu_custom_call.1} parent=1 // pred_check_branch
      %37 = sbr.rel (0) target = $region33
    $region32: #{tpu_custom_call.1} parent=1 // pred_region
      %38 = dma.done [#allocation4], 16
    $region33: #{tpu_custom_call.1} parent=1 // pred_fallthru
      _
    %39 = sfence
    %v40 = vld [vmem:[%s0] sm:$0x7]
    %v41 = vmul.f32 %v40, %v40
    %vm42 = vcmask 1042432
    %v43 = vsel %vm42, %v41, 0.0
    %v44 = vrot.slane %v43, 4
    %v45 = vadd.f32 %v43, %v44
    %v46 = vrot.slane %v45, 2
    %v47 = vadd.f32 %v45, %v46
    %v48 = vrot.slane %v47, 1
    %v49 = vadd.f32 %v47, %v48
    %v50 = vadd.f32 %v49, 1e-12
    %v51 = vrsqrt.pop %v50
    %v52 = vmul.f32 %v49, %v51
    %s53 = sld [smem:[#allocation2 + $0x1]]
    %s54 = sld [smem:[#allocation2 + $0x2]]
    %v55 = vstv %s53
    %v56 = vsub.f32 %v52, %v55
    %v57 = vmul.f32 %v56, %v56
    %v58 = vmul.f32 %v57, -4.0
    %v59 = vmul.f32 %v58, 1.442695
    %v60 = vpow.pop %v59
    %v61 = vstv %s54
    %v62 = vmul.f32 %v61, %v56
    %v63 = vmax.f32 %v62, -10.0
    %v64 = vmin.f32 %v63, 10.0
    %v65 = vmul.f32 %v64, 1.442695
    %v66 = vpow.pop %v65
    %v67 = vrcp.pop %v66
    %v68 = vmul.f32 1.0, %v67
    %v69 = vlaneseq
    %v70 = vshrl.u32 %v69, 7
    %v71 = vadd.s32 %v70, 8
    %v72 = vsub.s32 %v70, 8
    %vm73 = vcmp.lt.s32.totalorder %v72, 0
    %v74 = vsub.s32 0, %v72
    %v75 = vsel %vm73, %v74, %v72
    %vm76 = vcmp.lt.s32.totalorder %v70, 0
    %v77 = vsub.s32 0, %v70
    %v78 = vsel %vm76, %v77, %v70
    %vm79 = vcmp.ge.s32.totalorder %v70, 8
    %vm80 = vcmp.ge.s32.totalorder %v71, 8
    %v81 = vsel %vm79, 1, 0
    %v82 = vsel %vm80, 1, 0
    %vm83 = vcmp.eq.s32.totalorder %v81, 1
    %vm84 = vcmp.eq.s32.totalorder %v82, 1
    %v85 = vsel %vm83, %v66, %v68
    %v86 = vsel %vm84, %v66, %v68
    %v87 = vmul.f32 %v85, %v85
    %v88 = vmul.f32 %v86, %v86
    %v89 = vmul.f32 %v87, %v87
    %v90 = vmul.f32 %v88, %v88
    %v91 = vand.u32 %v75, 1
    %v92 = vand.u32 %v78, 1
    %vm93 = vcmp.ne.s32.totalorder %v91, 0
    %vm94 = vcmp.ne.s32.totalorder %v92, 0
    %v95 = vsel %vm93, 1, 0
    %v96 = vsel %vm94, 1, 0
    %vm97 = vcmp.eq.s32.totalorder %v95, 1
    %vm98 = vcmp.eq.s32.totalorder %v96, 1
    %v99 = vsel %vm97, %v85, 1.0
    %v100 = vsel %vm98, %v86, 1.0
    %v101 = vand.u32 %v75, 2
    %v102 = vand.u32 %v78, 2
    %vm103 = vcmp.ne.s32.totalorder %v101, 0
    %vm104 = vcmp.ne.s32.totalorder %v102, 0
    %v105 = vsel %vm103, 1, 0
    %v106 = vsel %vm104, 1, 0
    %vm107 = vcmp.eq.s32.totalorder %v105, 1
    %vm108 = vcmp.eq.s32.totalorder %v106, 1
    %v109 = vsel %vm107, %v87, 1.0
    %v110 = vsel %vm108, %v88, 1.0
    %v111 = vmul.f32 %v99, %v109
    %v112 = vmul.f32 %v100, %v110
    %v113 = vand.u32 %v75, 4
    %v114 = vand.u32 %v78, 4
    %vm115 = vcmp.ne.s32.totalorder %v113, 0
    %vm116 = vcmp.ne.s32.totalorder %v114, 0
    %v117 = vsel %vm115, 1, 0
    %v118 = vsel %vm116, 1, 0
    %vm119 = vcmp.eq.s32.totalorder %v117, 1
    %vm120 = vcmp.eq.s32.totalorder %v118, 1
    %v121 = vsel %vm119, %v89, 1.0
    %v122 = vsel %vm120, %v90, 1.0
    %v123 = vmul.f32 %v111, %v121
    %v124 = vmul.f32 %v112, %v122
    %v125 = vand.u32 %v75, 8
    %v126 = vand.u32 %v78, 8
    %vm127 = vcmp.ne.s32.totalorder %v125, 0
    %vm128 = vcmp.ne.s32.totalorder %v126, 0
    %v129 = vmul.f32 %v89, %v89
    %v130 = vmul.f32 %v90, %v90
    %v131 = vsel %vm127, 1, 0
    %v132 = vsel %vm128, 1, 0
    %vm133 = vcmp.eq.s32.totalorder %v131, 1
    %vm134 = vcmp.eq.s32.totalorder %v132, 1
    %v135 = vsel %vm133, %v129, 1.0
    %v136 = vsel %vm134, %v130, 1.0
    %v137 = vmul.f32 %v123, %v135
    %v138 = vmul.f32 %v124, %v136
    %v139 = vld [vmem:[%s2] sm:$0xff]
    %v140 = vld [vmem:[%s2 + $0x8] sm:$0xff]
    %v141 = vmul.f32 %v60, %v137
    %v142 = vmul.f32 %v60, %v138
    %144 = vset.pattern.permute.xlu0 0
    %145 = vperm.xlu0 %144, %v139
    %v146 = vpop.permute.xlu0 %145
    %149 = vset.pattern.permute.xlu0 0
    %150 = vperm.xlu0 %149, %v140
    %v151 = vpop.permute.xlu0 %150
    %v153 = vmul.f32 %v146, %v141
    %v154 = vmul.f32 %v151, %v142
    %v155 = vld [vmem:[%s1] sm:$0xff]
    %v156 = vld [vmem:[%s1 + $0x8] sm:$0xff]
    %158 = vset.pattern.permute.xlu0 0
    %159 = vperm.xlu0 %158, %v155
    %v160 = vpop.permute.xlu0 %159
    %163 = vset.pattern.permute.xlu0 0
    %164 = vperm.xlu0 %163, %v156
    %v165 = vpop.permute.xlu0 %164
    %v167 = vsub.f32 %v52, %v160
    %v168 = vsub.f32 %v52, %v165
    %v169 = vld [vmem:[%s3] sm:$0xff]
    %v170 = vld [vmem:[%s3 + $0x8] sm:$0xff]
    %v171 = vld [vmem:[%s4] sm:$0xff]
    %v172 = vld [vmem:[%s4 + $0x8] sm:$0xff]
    %v173 = vld [vmem:[%s4 + $0x10] sm:$0xff]
    %v174 = vld [vmem:[%s4 + $0x18] sm:$0xff]
    %176 = vset.pattern.permute.xlu0 0
    %177 = vperm.xlu0 %176, %v171
    %v178 = vpop.permute.xlu0 %177
    %181 = vset.pattern.permute.xlu0 0
    %182 = vperm.xlu0 %181, %v172
    %v183 = vpop.permute.xlu0 %182
    %186 = vset.pattern.permute.xlu0 0
    %187 = vperm.xlu0 %186, %v173
    %v188 = vpop.permute.xlu0 %187
    %191 = vset.pattern.permute.xlu0 0
    %192 = vperm.xlu0 %191, %v174
    %v193 = vpop.permute.xlu0 %192
    %195 = vxpose.xlu0.b32.start [1/16] %v169, 128
    %196 = vxpose.xlu0.b32.cont [2/16] %v170, 128
    %197 = vxpose.xlu0.b32.cont [3/16] 0.0, 128
    %198 = vxpose.xlu0.b32.cont [4/16] 0.0, 128
    %199 = vxpose.xlu0.b32.cont [5/16] 0.0, 128
    %200 = vxpose.xlu0.b32.cont [6/16] 0.0, 128
    %201 = vxpose.xlu0.b32.cont [7/16] 0.0, 128
    %202 = vxpose.xlu0.b32.cont [8/16] 0.0, 128
    %203 = vxpose.xlu0.b32.cont [9/16] 0.0, 128
    %204 = vxpose.xlu0.b32.cont [10/16] 0.0, 128
    %205 = vxpose.xlu0.b32.cont [11/16] 0.0, 128
    %206 = vxpose.xlu0.b32.cont [12/16] 0.0, 128
    %207 = vxpose.xlu0.b32.cont [13/16] 0.0, 128
    %208 = vxpose.xlu0.b32.cont [14/16] 0.0, 128
    %209 = vxpose.xlu0.b32.cont [15/16] 0.0, 128
    %210 = vxpose.xlu0.b32.end [16/16] 0.0, 128
    %v211 = vpop.trf.xlu0
    %v212 = vpop.trf.xlu0
    %v213 = vpop.trf.xlu0
    %v214 = vpop.trf.xlu0
    %v215 = vpop.trf.xlu0
    %v216 = vpop.trf.xlu0
    %v217 = vpop.trf.xlu0
    %v218 = vpop.trf.xlu0
    %v219 = vpop.trf.xlu0
    %v220 = vpop.trf.xlu0
    %v221 = vpop.trf.xlu0
    %v222 = vpop.trf.xlu0
    %v223 = vpop.trf.xlu0
    %v224 = vpop.trf.xlu0
    %v225 = vpop.trf.xlu0
    %v226 = vpop.trf.xlu0
    %vm227 = vcmask 130048
    %v229 = vsel %vm227, %v211, 0
    %v232 = vsel %vm227, %v212, 0
    %v235 = vsel %vm227, %v213, 0
    %v238 = vsel %vm227, %v214, 0
    %240 = vmatprep.subr.mxu0 0.0
    %241 = vmatpush1.msra.mxu0 %v153
    %242 = vmatprep.subr.mxu0 0.0
    %243 = vmatpush1.msra.mxu0 %v154
    %244 = vmatprep.subr.mxu0 0.0
    %245 = vmatpush1.msra.mxu0 0.0
    %246 = vmatprep.subr.mxu0 0.0
    %247 = vmatpush1.msra.mxu0 0.0
    %248 = vmatprep.subr.mxu0 0.0
    %249 = vmatpush1.msra.mxu0 0.0
    %250 = vmatprep.subr.mxu0 0.0
    %251 = vmatpush1.msra.mxu0 0.0
    %252 = vmatprep.subr.mxu0 0.0
    %253 = vmatpush1.msra.mxu0 0.0
    %254 = vmatprep.subr.mxu0 0.0
    %255 = vmatpush1.msra.mxu0 0.0
    %256 = vmatprep.subr.mxu0 0.0
    %257 = vmatpush1.msra.mxu0 0.0
    %258 = vmatprep.subr.mxu0 0.0
    %259 = vmatpush1.msra.mxu0 0.0
    %260 = vmatprep.subr.mxu0 0.0
    %261 = vmatpush1.msra.mxu0 0.0
    %262 = vmatprep.subr.mxu0 0.0
    %263 = vmatpush1.msra.mxu0 0.0
    %264 = vmatprep.subr.mxu0 0.0
    %265 = vmatpush1.msra.mxu0 0.0
    %266 = vmatprep.subr.mxu0 0.0
    %267 = vmatpush1.msra.mxu0 0.0
    %268 = vmatprep.subr.mxu0 0.0
    %269 = vmatpush1.msra.mxu0 0.0
    %270 = vmatprep.subr.mxu0 0.0
    %271 = vmatpush1.msra.mxu0 0.0
    %272 = vmatprep.subr.mxu0 0.0
    %273 = vmatpush1.msra.mxu0 0.0
    %274 = vmatprep.subr.mxu0 0.0
    %275 = vmatpush1.msra.mxu0 0.0
    %276 = vmatprep.subr.mxu0 0.0
    %277 = vmatpush1.msra.mxu0 0.0
    %278 = vmatprep.subr.mxu0 0.0
    %279 = vmatpush1.msra.mxu0 0.0
    %280 = vmatprep.subr.mxu0 0.0
    %281 = vmatpush1.msra.mxu0 0.0
    %282 = vmatprep.subr.mxu0 0.0
    %283 = vmatpush1.msra.mxu0 0.0
    %284 = vmatprep.subr.mxu0 0.0
    %285 = vmatpush1.msra.mxu0 0.0
    %286 = vmatprep.subr.mxu0 0.0
    %287 = vmatpush1.msra.mxu0 0.0
    %288 = vmatprep.subr.mxu0 0.0
    %289 = vmatpush1.msra.mxu0 0.0
    %290 = vmatprep.subr.mxu0 0.0
    %291 = vmatpush1.msra.mxu0 0.0
    %292 = vmatprep.subr.mxu0 0.0
    %293 = vmatpush1.msra.mxu0 0.0
    %294 = vmatprep.subr.mxu0 0.0
    %295 = vmatpush1.msra.mxu0 0.0
    %296 = vmatprep.subr.mxu0 0.0
    %297 = vmatpush1.msra.mxu0 0.0
    %298 = vmatprep.subr.mxu0 0.0
    %299 = vmatpush1.msra.mxu0 0.0
    %300 = vmatprep.subr.mxu0 0.0
    %301 = vmatpush1.msra.mxu0 0.0
    %302 = vmatprep.subr.mxu0 0.0
    %303 = vmatpush1.msra.mxu0 0.0
    %304 = vmatprep.mubr.f32.mxu0 0.0
    %305 = vmatmul.mubr.f32.gmra.mrb[0].mxu0 %v229
    %v306 = vpop.f32.mrb[0].mxu0
    %v307 = vadd.f32 %v178, %v306
    %v308 = vpop.f32.mrb[0].mxu0
    %309 = vmatprep.mubr.f32.mxu0 0.0
    %310 = vmatmul.mubr.f32.gmra.mrb[0].mxu0 %v232
    %v311 = vpop.f32.mrb[0].mxu0
    %v312 = vadd.f32 %v183, %v311
    %v313 = vpop.f32.mrb[0].mxu0
    %314 = vmatprep.mubr.f32.mxu0 0.0
    %315 = vmatmul.mubr.f32.gmra.mrb[0].mxu0 %v235
    %v316 = vpop.f32.mrb[0].mxu0
    %v317 = vadd.f32 %v188, %v316
    %v318 = vpop.f32.mrb[0].mxu0
    %319 = vmatprep.mubr.f32.mxu0 0.0
    %320 = vmatmul.mubr.f32.gmra.mrb[0].mxu0 %v238
    %v321 = vpop.f32.mrb[0].mxu0
    %v322 = vadd.f32 %v193, %v321
    %v323 = vpop.f32.mrb[0].mxu0
    %324 = vdwg.mxu0
    %v325 = vtanh.pop %v307
    %v326 = vtanh.pop %v312
    %v327 = vtanh.pop %v317
    %v328 = vtanh.pop %v322
    %v329 = vld [vmem:[%s5] sm:$0xff]
    %v330 = vld [vmem:[%s5 + $0x8] sm:$0xff]
    %v331 = vld [vmem:[%s5 + $0x10] sm:$0xff]
    %v332 = vld [vmem:[%s5 + $0x18] sm:$0xff]
    %s333 = sld [smem:[#allocation2]]
    %v334 = vstv %s333
    %335 = vxpose.xlu0.b32.start [1/16] %v329, 128
    %336 = vxpose.xlu0.b32.cont [2/16] %v330, 128
    %337 = vxpose.xlu0.b32.cont [3/16] %v331, 128
    %338 = vxpose.xlu0.b32.cont [4/16] %v332, 128
    %339 = vxpose.xlu0.b32.cont [5/16] 0.0, 128
    %340 = vxpose.xlu0.b32.cont [6/16] 0.0, 128
    %341 = vxpose.xlu0.b32.cont [7/16] 0.0, 128
    %342 = vxpose.xlu0.b32.cont [8/16] 0.0, 128
    %343 = vxpose.xlu0.b32.cont [9/16] 0.0, 128
    %344 = vxpose.xlu0.b32.cont [10/16] 0.0, 128
    %345 = vxpose.xlu0.b32.cont [11/16] 0.0, 128
    %346 = vxpose.xlu0.b32.cont [12/16] 0.0, 128
    %347 = vxpose.xlu0.b32.cont [13/16] 0.0, 128
    %348 = vxpose.xlu0.b32.cont [14/16] 0.0, 128
    %349 = vxpose.xlu0.b32.cont [15/16] 0.0, 128
    %350 = vxpose.xlu0.b32.end [16/16] 0.0, 128
    %v351 = vpop.trf.xlu0
    %v352 = vpop.trf.xlu0
    %v353 = vpop.trf.xlu0
    %v354 = vpop.trf.xlu0
    %v355 = vpop.trf.xlu0
    %v356 = vpop.trf.xlu0
    %v357 = vpop.trf.xlu0
    %v358 = vpop.trf.xlu0
    %v359 = vpop.trf.xlu0
    %v360 = vpop.trf.xlu0
    %v361 = vpop.trf.xlu0
    %v362 = vpop.trf.xlu0
    %v363 = vpop.trf.xlu0
    %v364 = vpop.trf.xlu0
    %v365 = vpop.trf.xlu0
    %v366 = vpop.trf.xlu0
    %vm367 = vcmask 261120
    %v369 = vsel %vm367, %v351, 0
    %371 = vmatprep.subr.mxu0 0.0
    %372 = vmatpush1.msra.mxu0 %v325
    %373 = vmatprep.subr.mxu0 0.0
    %374 = vmatpush1.msra.mxu0 %v326
    %375 = vmatprep.subr.mxu0 0.0
    %376 = vmatpush1.msra.mxu0 %v327
    %377 = vmatprep.subr.mxu0 0.0
    %378 = vmatpush1.msra.mxu0 %v328
    %379 = vmatprep.subr.mxu0 0.0
    %380 = vmatpush1.msra.mxu0 0.0
    %381 = vmatprep.subr.mxu0 0.0
    %382 = vmatpush1.msra.mxu0 0.0
    %383 = vmatprep.subr.mxu0 0.0
    %384 = vmatpush1.msra.mxu0 0.0
    %385 = vmatprep.subr.mxu0 0.0
    %386 = vmatpush1.msra.mxu0 0.0
    %387 = vmatprep.subr.mxu0 0.0
    %388 = vmatpush1.msra.mxu0 0.0
    %389 = vmatprep.subr.mxu0 0.0
    %390 = vmatpush1.msra.mxu0 0.0
    %391 = vmatprep.subr.mxu0 0.0
    %392 = vmatpush1.msra.mxu0 0.0
    %393 = vmatprep.subr.mxu0 0.0
    %394 = vmatpush1.msra.mxu0 0.0
    %395 = vmatprep.subr.mxu0 0.0
    %396 = vmatpush1.msra.mxu0 0.0
    %397 = vmatprep.subr.mxu0 0.0
    %398 = vmatpush1.msra.mxu0 0.0
    %399 = vmatprep.subr.mxu0 0.0
    %400 = vmatpush1.msra.mxu0 0.0
    %401 = vmatprep.subr.mxu0 0.0
    %402 = vmatpush1.msra.mxu0 0.0
    %403 = vmatprep.subr.mxu0 0.0
    %404 = vmatpush1.msra.mxu0 0.0
    %405 = vmatprep.subr.mxu0 0.0
    %406 = vmatpush1.msra.mxu0 0.0
    %407 = vmatprep.subr.mxu0 0.0
    %408 = vmatpush1.msra.mxu0 0.0
    %409 = vmatprep.subr.mxu0 0.0
    %410 = vmatpush1.msra.mxu0 0.0
    %411 = vmatprep.subr.mxu0 0.0
    %412 = vmatpush1.msra.mxu0 0.0
    %413 = vmatprep.subr.mxu0 0.0
    %414 = vmatpush1.msra.mxu0 0.0
    %415 = vmatprep.subr.mxu0 0.0
    %416 = vmatpush1.msra.mxu0 0.0
    %417 = vmatprep.subr.mxu0 0.0
    %418 = vmatpush1.msra.mxu0 0.0
    %419 = vmatprep.subr.mxu0 0.0
    %420 = vmatpush1.msra.mxu0 0.0
    %421 = vmatprep.subr.mxu0 0.0
    %422 = vmatpush1.msra.mxu0 0.0
    %423 = vmatprep.subr.mxu0 0.0
    %424 = vmatpush1.msra.mxu0 0.0
    %425 = vmatprep.subr.mxu0 0.0
    %426 = vmatpush1.msra.mxu0 0.0
    %427 = vmatprep.subr.mxu0 0.0
    %428 = vmatpush1.msra.mxu0 0.0
    %429 = vmatprep.subr.mxu0 0.0
    %430 = vmatpush1.msra.mxu0 0.0
    %431 = vmatprep.subr.mxu0 0.0
    %432 = vmatpush1.msra.mxu0 0.0
    %433 = vmatprep.subr.mxu0 0.0
    %434 = vmatpush1.msra.mxu0 0.0
    %435 = vmatprep.mubr.f32.mxu0 0.0
    %436 = vmatmul.mubr.f32.gmra.mrb[0].mxu0 %v369
    %v437 = vpop.f32.mrb[0].mxu0
    %v438 = vadd.f32 %v334, %v437
    %v439 = vpop.f32.mrb[0].mxu0
    %440 = vdwg.mxu0
    %v441 = vmul.f32 %v325, %v325
    %v442 = vmul.f32 %v326, %v326
    %v443 = vmul.f32 %v327, %v327
    %v444 = vmul.f32 %v328, %v328
    %v445 = vsub.f32 1.0, %v441
    %v446 = vsub.f32 1.0, %v442
    %v447 = vsub.f32 1.0, %v443
    %v448 = vsub.f32 1.0, %v444
    %450 = vset.pattern.permute.xlu0 0
    %451 = vperm.xlu0 %450, %v329
    %v452 = vpop.permute.xlu0 %451
    %455 = vset.pattern.permute.xlu0 0
    %456 = vperm.xlu0 %455, %v330
    %v457 = vpop.permute.xlu0 %456
    %460 = vset.pattern.permute.xlu0 0
    %461 = vperm.xlu0 %460, %v331
    %v462 = vpop.permute.xlu0 %461
    %465 = vset.pattern.permute.xlu0 0
    %466 = vperm.xlu0 %465, %v332
    %v467 = vpop.permute.xlu0 %466
    %v469 = vmul.f32 %v445, %v452
    %v470 = vmul.f32 %v446, %v457
    %v471 = vmul.f32 %v447, %v462
    %v472 = vmul.f32 %v448, %v467
    %v474 = vsel %vm367, %v169, 0
    %v477 = vsel %vm367, %v170, 0
    %479 = vmatprep.subr.mxu0 0.0
    %480 = vmatpush1.msra.mxu0 %v469
    %481 = vmatprep.subr.mxu0 0.0
    %482 = vmatpush1.msra.mxu0 %v470
    %483 = vmatprep.subr.mxu0 0.0
    %484 = vmatpush1.msra.mxu0 %v471
    %485 = vmatprep.subr.mxu0 0.0
    %486 = vmatpush1.msra.mxu0 %v472
    %487 = vmatprep.subr.mxu0 0.0
    %488 = vmatpush1.msra.mxu0 0.0
    %489 = vmatprep.subr.mxu0 0.0
    %490 = vmatpush1.msra.mxu0 0.0
    %491 = vmatprep.subr.mxu0 0.0
    %492 = vmatpush1.msra.mxu0 0.0
    %493 = vmatprep.subr.mxu0 0.0
    %494 = vmatpush1.msra.mxu0 0.0
    %495 = vmatprep.subr.mxu0 0.0
    %496 = vmatpush1.msra.mxu0 0.0
    %497 = vmatprep.subr.mxu0 0.0
    %498 = vmatpush1.msra.mxu0 0.0
    %499 = vmatprep.subr.mxu0 0.0
    %500 = vmatpush1.msra.mxu0 0.0
    %501 = vmatprep.subr.mxu0 0.0
    %502 = vmatpush1.msra.mxu0 0.0
    %503 = vmatprep.subr.mxu0 0.0
    %504 = vmatpush1.msra.mxu0 0.0
    %505 = vmatprep.subr.mxu0 0.0
    %506 = vmatpush1.msra.mxu0 0.0
    %507 = vmatprep.subr.mxu0 0.0
    %508 = vmatpush1.msra.mxu0 0.0
    %509 = vmatprep.subr.mxu0 0.0
    %510 = vmatpush1.msra.mxu0 0.0
    %511 = vmatprep.subr.mxu0 0.0
    %512 = vmatpush1.msra.mxu0 0.0
    %513 = vmatprep.subr.mxu0 0.0
    %514 = vmatpush1.msra.mxu0 0.0
    %515 = vmatprep.subr.mxu0 0.0
    %516 = vmatpush1.msra.mxu0 0.0
    %517 = vmatprep.subr.mxu0 0.0
    %518 = vmatpush1.msra.mxu0 0.0
    %519 = vmatprep.subr.mxu0 0.0
    %520 = vmatpush1.msra.mxu0 0.0
    %521 = vmatprep.subr.mxu0 0.0
    %522 = vmatpush1.msra.mxu0 0.0
    %523 = vmatprep.subr.mxu0 0.0
    %524 = vmatpush1.msra.mxu0 0.0
    %525 = vmatprep.subr.mxu0 0.0
    %526 = vmatpush1.msra.mxu0 0.0
    %527 = vmatprep.subr.mxu0 0.0
    %528 = vmatpush1.msra.mxu0 0.0
    %529 = vmatprep.subr.mxu0 0.0
    %530 = vmatpush1.msra.mxu0 0.0
    %531 = vmatprep.subr.mxu0 0.0
    %532 = vmatpush1.msra.mxu0 0.0
    %533 = vmatprep.subr.mxu0 0.0
    %534 = vmatpush1.msra.mxu0 0.0
    %535 = vmatprep.subr.mxu0 0.0
    %536 = vmatpush1.msra.mxu0 0.0
    %537 = vmatprep.subr.mxu0 0.0
    %538 = vmatpush1.msra.mxu0 0.0
    %539 = vmatprep.subr.mxu0 0.0
    %540 = vmatpush1.msra.mxu0 0.0
    %541 = vmatprep.subr.mxu0 0.0
    %542 = vmatpush1.msra.mxu0 0.0
    %543 = vmatprep.mubr.f32.mxu0 0.0
    %544 = vmatmul.mubr.f32.gmra.mrb[0].mxu0 %v474
    %v545 = vpop.f32.mrb[0].mxu0
    %v546 = vadd.f32 0.0, %v545
    %v547 = vpop.f32.mrb[0].mxu0
    %548 = vmatprep.mubr.f32.mxu0 0.0
    %549 = vmatmul.mubr.f32.gmra.mrb[0].mxu0 %v477
    %v550 = vpop.f32.mrb[0].mxu0
    %v551 = vadd.f32 0.0, %v550
    %v552 = vpop.f32.mrb[0].mxu0
    %553 = vdwg.mxu0
    %v554 = vmul.f32 %v167, %v153
    %v555 = vmul.f32 %v168, %v154
    %v556 = vmul.f32 %v546, %v554
    %v557 = vmul.f32 %v551, %v555
    %v558 = vadd.f32 %v556, %v557
    %v559 = vrot.slane %v558, 4
    %v560 = vadd.f32 %v558, %v559
    %v561 = vrot.slane %v560, 2
    %v562 = vadd.f32 %v560, %v561
    %v563 = vrot.slane %v562, 1
    %v564 = vadd.f32 %v562, %v563
    %v565 = vmul.f32 %v564, %v51
    %v566 = vmul.f32 %v565, -8.0
    %v567 = vmul.f32 %v566, %v40
    %568 = vst [vmem:[#allocation5] sm:$0x7] %v567
    %569 = vst [vmem:[#allocation5 + $0x3] sm:$0x1] %v438
    // Predicated region
    $region34: #{tpu_custom_call.1} parent=1 // pred_check
      _
    $region35: #{tpu_custom_call.1} parent=1 // pred_check_branch
      %571 = sbr.rel (0) target = $region37
    $region36: #{tpu_custom_call.1} parent=1 // pred_region
      %s573 = ssub.s32 64, 64
      %574 = vsyncadd [#allocation3], %s573
      %s576 = sshll.u32 [#allocation5], 4
      %s577 = int_to_ptr.vmem [resolvable:$true] %s576
      %579 = dma.vmem_to_hbm [thread:$0]  %s577, 64, %s7, [#allocation3]
    $region37: #{tpu_custom_call.1} parent=1 // pred_fallthru
      _
    // Predicated region
    $region38: #{tpu_custom_call.1} parent=1 // pred_check
      _
    $region39: #{tpu_custom_call.1} parent=1 // pred_check_branch
      %581 = sbr.rel (0) target = $region41
    $region40: #{tpu_custom_call.1} parent=1 // pred_region
      %582 = dma.done [#allocation3], 64
    $region41: #{tpu_custom_call.1} parent=1 // pred_fallthru
      _
    %583 = vsyncpa [#allocation3], 1
    %584 = vsyncpa [#allocation4], 1

</llo_original>
